<compile_context>
chip_gen: v6e
topology: v6e:2x2x1
jax: 0.10.0
libtpu: 0.0.40
codegen_flags: <defaults>
</compile_context>

<pallas_src>
import functools

import jax
import jax.numpy as jnp
from jax.experimental import pallas as pl
from jax.experimental.pallas import tpu as pltpu

C_LAT = 4          # latent channels (z and c_concat)
H = W = 16
HW = H * W         # 256 lanes (multiple of 128 -> lane dense)
SEQ = 8            # text conditioning sequence length
HID = 32           # text conditioning hidden size


def _cfg_denoiser_kernel(bpc, scal_ref, lat_ref, cross_ref, w_ref, sig_ref, o_ref):
    """One grid step = `bpc` batches packed along the sublane axis.

    scal_ref : SMEM [2]               = [text_cfg_scale, image_cfg_scale]
    lat_ref  : VMEM [bpc*3C, HW]      rows per batch: [z ; c_concat_cond ; c_concat_uncond]
    cross_ref: VMEM [bpc*2*SEQ, HID]  rows per batch: [crossattn_cond ; crossattn_uncond]
    w_ref    : VMEM [C, 2C + 1 + HID] = [w1 | b1 | wc]
    sig_ref  : VMEM [bpc*C, 1]        sigma broadcast per output row
    o_ref    : VMEM [bpc*C, HW]
    """
    t_scale = scal_ref[0]
    i_scale = scal_ref[1]

    w1a = w_ref[:, 0:C_LAT]                              # [C, C]
    w1b = w_ref[:, C_LAT:2 * C_LAT]                      # [C, C]
    b1 = w_ref[:, 2 * C_LAT:2 * C_LAT + 1]               # [C, 1]
    wc = w_ref[:, 2 * C_LAT + 1:]                        # [C, HID]

    # (1) Fold the image-CFG combine into an effective weight (single-vreg
    # lane concat): out_ch = w1a@z + i*w1b@ccc + (1-i)*w1b@ccu.
    w3 = jnp.concatenate([w1a, i_scale * w1b, (1.0 - i_scale) * w1b], axis=1)  # [C, 3C]

    # (2) Block-diagonal expansion so every batch in the chunk goes through a
    # single MXU push against the packed [bpc*3C, HW] latent block.  The
    # expansion itself is a couple of single-vreg ops ([bpc*C, bpc*3C] tiny).
    if bpc == 1:
        wblk = w3
    else:
        zero = jnp.zeros_like(w3)
        wblk = jnp.concatenate(
            [jnp.concatenate([w3 if j == b else zero for j in range(bpc)], axis=1)
             for b in range(bpc)],
            axis=0)                                      # [bpc*C, bpc*3C]

    h = jnp.dot(wblk, lat_ref[...], preferred_element_type=jnp.float32)  # [bpc*C, HW]

    # Text-CFG context folded linearly (sequence mean folded into the
    # projection):  ctx_b = b1 + (1/SEQ) * wc @ (sum_u + t*(sum_c - sum_u)).
    # VPU multiply + lane reduce (XLU); no extra MXU push.  bpc is static, so
    # this loop fully unrolls over tiny [1, HID] / [C, 1] vregs.
    cross = cross_ref[...]                               # [bpc*2*SEQ, HID]
    parts = []
    for b in range(bpc):
        r0 = b * 2 * SEQ
        sum_c = jnp.sum(cross[r0:r0 + SEQ], axis=0, keepdims=True)            # [1, HID]
        sum_u = jnp.sum(cross[r0 + SEQ:r0 + 2 * SEQ], axis=0, keepdims=True)  # [1, HID]
        csum = sum_u + t_scale * (sum_c - sum_u)                              # [1, HID]
        parts.append(b1 + jnp.sum(wc * csum, axis=1, keepdims=True) * (1.0 / SEQ))
    ctx = parts[0] if bpc == 1 else jnp.concatenate(parts, axis=0)            # [bpc*C, 1]

    o_ref[...] = sig_ref[...] * (h + ctx)


def cfg_denoiser(z, sigma, cond, uncond, text_cfg_scale, image_cfg_scale, params,
                 *, num_chunks=1):
    """z: [B, C, H, W]; sigma: [B]; cond/uncond dicts like the PyTorch module.

    num_chunks: grid steps.  Default 1 (fully collapsed — best on single-TC
    v5e/v6e).  On v7x use num_chunks=2 once B is large enough that each chunk
    still holds an even number of batches (bpc*C must be a multiple of 8).
    """
    w1, wc, b1 = params
    B = z.shape[0]
    assert B % num_chunks == 0, "num_chunks must divide the batch"
    bpc = B // num_chunks
    # (8,128) BlockSpec constraint: chunked (non-full) blocks need 8-aligned
    # sublane extents -> bpc*C_LAT (=4*bpc) must be a multiple of 8.
    assert num_chunks == 1 or (bpc * C_LAT) % 8 == 0, (
        "num_chunks > 1 requires an even per-chunk batch count at C=4")

    f32 = jnp.float32

    # Packed operands (batch along the sublane axis; plain row-major reshapes).
    # TODO(synk): at real UNet latent sizes pass z / c_concat unpacked as
    # separate BlockSpec'd inputs to avoid the extra XLA HBM round-trip of
    # these concats; at HW=256 it is a wash.
    z2 = z.reshape(B, C_LAT, HW).astype(f32)
    ccc = cond["c_concat"][0].reshape(B, C_LAT, HW).astype(f32)
    ccu = uncond["c_concat"][0].reshape(B, C_LAT, HW).astype(f32)
    lat = jnp.concatenate([z2, ccc, ccu], axis=1).reshape(B * 3 * C_LAT, HW)

    cac = cond["c_crossattn"][0].astype(f32)             # [B, SEQ, HID]
    cau = uncond["c_crossattn"][0].astype(f32)
    cross = jnp.concatenate([cac, cau], axis=1).reshape(B * 2 * SEQ, HID)

    wblob = jnp.concatenate([w1.astype(f32), b1.astype(f32), wc.astype(f32)],
                            axis=1)                      # [C, 2C+1+HID]

    sig_rows = jnp.repeat(jnp.asarray(sigma, f32).reshape(B), C_LAT).reshape(
        B * C_LAT, 1)                                    # [B*C, 1]

    scal = jnp.array([text_cfg_scale, image_cfg_scale], f32)   # SMEM prefetch

    grid_spec = pltpu.PrefetchScalarGridSpec(
        num_scalar_prefetch=1,
        grid=(num_chunks,),
        in_specs=[
            pl.BlockSpec((bpc * 3 * C_LAT, HW), lambda s, _: (s, 0)),
            pl.BlockSpec((bpc * 2 * SEQ, HID), lambda s, _: (s, 0)),
            pl.BlockSpec((C_LAT, 2 * C_LAT + 1 + HID), lambda s, _: (0, 0)),
            pl.BlockSpec((bpc * C_LAT, 1), lambda s, _: (s, 0)),
        ],
        out_specs=pl.BlockSpec((bpc * C_LAT, HW), lambda s, _: (s, 0)),
    )

    out = pl.pallas_call(
        functools.partial(_cfg_denoiser_kernel, bpc),
        out_shape=jax.ShapeDtypeStruct((B * C_LAT, HW), f32),
        grid_spec=grid_spec,
        compiler_params=pltpu.CompilerParams(
            dimension_semantics=("parallel",)),   # shards chunks across TCs on v7x
    )(scal, lat, cross, wblob, sig_rows)
    return out.reshape(B, C_LAT, H, W)


def cfg_denoiser_reference(z, sigma, cond, uncond, t, i, params):
    """Pure-JAX mirror of the PyTorch forward with the same synthetic inner model."""
    w1, wc, b1 = params

    def inner_model(x, s, cross, concat):
        inp = jnp.concatenate([x, concat], axis=1)                     # [n, 2C, H, W]
        h = jnp.einsum("oc,nchw->nohw", w1, inp) + b1.reshape(1, C_LAT, 1, 1)
        ctx = jnp.mean(jnp.einsum("nsk,ok->nos", cross, wc), axis=2)   # [n, C]
        return (h + ctx[:, :, None, None]) * s[:, None, None, None]

    outs = []
    for b in range(z.shape[0]):
        cfg_z = jnp.repeat(z[b:b + 1], 3, axis=0)
        cfg_sigma = jnp.repeat(sigma[b:b + 1], 3, axis=0)
        cross = jnp.concatenate([cond["c_crossattn"][0][b:b + 1],
                                 uncond["c_crossattn"][0][b:b + 1],
                                 uncond["c_crossattn"][0][b:b + 1]], axis=0)
        concat = jnp.concatenate([cond["c_concat"][0][b:b + 1],
                                  cond["c_concat"][0][b:b + 1],
                                  uncond["c_concat"][0][b:b + 1]], axis=0)
        out = inner_model(cfg_z, cfg_sigma, cross, concat)
        out_cond, out_img_cond, out_uncond = out[0:1], out[1:2], out[2:3]
        outs.append(out_uncond + t * (out_cond - out_img_cond)
                    + i * (out_img_cond - out_uncond))
    return jnp.concatenate(outs, axis=0)


if __name__ == "__main__":
    key = jax.random.PRNGKey(0)
    k = jax.random.split(key, 8)
    B = 2

    # deterministic synthetic inner-model parameters
    w1 = jax.random.normal(k[0], (C_LAT, 2 * C_LAT), jnp.float32) * 0.2
    wc = jax.random.normal(k[1], (C_LAT, HID), jnp.float32) * 0.1
    b1 = jax.random.normal(k[2], (C_LAT, 1), jnp.float32) * 0.05
    params = (w1, wc, b1)

    # example inputs (PyTorch NCHW conventions; B independent latents)
    z = jax.random.normal(k[3], (B, C_LAT, H, W), jnp.float32)
    sigma = jnp.abs(jax.random.normal(k[4], (B,), jnp.float32)) + 0.5
    cond = {
        "c_crossattn": [jax.random.normal(k[5], (B, SEQ, HID), jnp.float32)],
        "c_concat": [jax.random.normal(k[6], (B, C_LAT, H, W), jnp.float32)],
    }
    uncond = {
        "c_crossattn": [jnp.zeros((B, SEQ, HID), jnp.float32)],
        "c_concat": [jax.random.normal(k[7], (B, C_LAT, H, W), jnp.float32)],
    }
    text_cfg_scale = 7.5
    image_cfg_scale = 1.5

    # Fully collapsed grid (num_chunks=1): one step, [8, 256] lane/sublane-dense
    # output, single MXU push for both batches.
    out = cfg_denoiser(z, sigma, cond, uncond, text_cfg_scale, image_cfg_scale, params)
    out = jax.block_until_ready(out)

    ref = cfg_denoiser_reference(z, sigma, cond, uncond,
                                 text_cfg_scale, image_cfg_scale, params)
    assert out.shape == (B, C_LAT, H, W)
    assert jnp.allclose(out, ref, atol=1e-4, rtol=1e-4), "mismatch vs reference"

    print("KERNEL_OK")
</pallas_src>

<mosaic_0001>
module attributes {stable_mosaic.version = 11 : i64} {
  func.func @_cfg_denoiser_kernel(%arg0: i32, %arg1: memref<2xf32, #tpu.memory_space<smem>>, %arg2: memref<24x256xf32, #tpu.memory_space<vmem>>, %arg3: memref<32x32xf32, #tpu.memory_space<vmem>>, %arg4: memref<4x41xf32, #tpu.memory_space<vmem>>, %arg5: memref<8x1xf32, #tpu.memory_space<vmem>>, %arg6: memref<8x256xf32, #tpu.memory_space<vmem>>) attributes {dimension_semantics = [#tpu.dimension_semantics<parallel>], iteration_bounds = array<i64: 1>, scalar_prefetch = 1 : i64, scratch_operands = 0 : i64, tpu.core_type = #tpu.core_type<tc>, window_params = [{transform_indices = @transform_0, window_bounds = array<i64: 24, 256>}, {transform_indices = @transform_1, window_bounds = array<i64: 32, 32>}, {pipeline_mode = #tpu.pipeline_mode<synchronous>, transform_indices = @transform_2, window_bounds = array<i64: 4, 41>}, {transform_indices = @transform_3, window_bounds = array<i64: 8, 1>}, {transform_indices = @transform_4, window_bounds = array<i64: 8, 256>}]} {
    %c0 = arith.constant 0 : index
    %0 = memref.load %arg1[%c0] : memref<2xf32, #tpu.memory_space<smem>>
    %c1 = arith.constant 1 : index
    %1 = memref.load %arg1[%c1] : memref<2xf32, #tpu.memory_space<smem>>
    %c0_0 = arith.constant 0 : index
    %c0_1 = arith.constant 0 : index
    %2 = vector.load %arg4[%c0_0, %c0_1] : memref<4x41xf32, #tpu.memory_space<vmem>>, vector<4x4xf32>
    %c0_2 = arith.constant 0 : index
    %c4 = arith.constant 4 : index
    %3 = vector.load %arg4[%c0_2, %c4] : memref<4x41xf32, #tpu.memory_space<vmem>>, vector<4x4xf32>
    %c0_3 = arith.constant 0 : index
    %c8 = arith.constant 8 : index
    %4 = vector.load %arg4[%c0_3, %c8] : memref<4x41xf32, #tpu.memory_space<vmem>>, vector<4x1xf32>
    %c0_4 = arith.constant 0 : index
    %c9 = arith.constant 9 : index
    %5 = vector.load %arg4[%c0_4, %c9] : memref<4x41xf32, #tpu.memory_space<vmem>>, vector<4x32xf32>
    %6 = vector.broadcast %1 : f32 to vector<4x4xf32>
    %7 = arith.mulf %6, %3 : vector<4x4xf32>
    %cst = arith.constant 1.000000e+00 : f32
    %8 = arith.subf %cst, %1 : f32
    %9 = vector.broadcast %8 : f32 to vector<4x4xf32>
    %10 = arith.mulf %9, %3 : vector<4x4xf32>
    %11 = tpu.concatenate %2, %7, %10 in 1 : vector<4x4xf32>, vector<4x4xf32>, vector<4x4xf32> -> vector<4x12xf32>
    %cst_5 = arith.constant 0.000000e+00 : f32
    %12 = vector.broadcast %cst_5 : f32 to vector<4x12xf32>
    %13 = tpu.concatenate %11, %12 in 1 : vector<4x12xf32>, vector<4x12xf32> -> vector<4x24xf32>
    %14 = tpu.concatenate %12, %11 in 1 : vector<4x12xf32>, vector<4x12xf32> -> vector<4x24xf32>
    %15 = tpu.concatenate %13, %14 in 0 : vector<4x24xf32>, vector<4x24xf32> -> vector<8x24xf32>
    %c0_6 = arith.constant 0 : index
    %c0_7 = arith.constant 0 : index
    %16 = vector.load %arg2[%c0_6, %c0_7] : memref<24x256xf32, #tpu.memory_space<vmem>>, vector<24x256xf32>
    %cst_8 = arith.constant dense<0.000000e+00> : vector<8x256xf32>
    %17 = tpu.matmul %15, %16, %cst_8 {dimension_numbers = #tpu.dot_dimension_numbers<[1], [0], [0], [1], [0, 0, 1, 1], [], []>} : vector<8x24xf32>, vector<24x256xf32>, vector<8x256xf32> -> vector<8x256xf32>
    %c0_9 = arith.constant 0 : index
    %c0_10 = arith.constant 0 : index
    %18 = vector.load %arg3[%c0_9, %c0_10] : memref<32x32xf32, #tpu.memory_space<vmem>>, vector<32x32xf32>
    %19 = vector.extract_strided_slice %18 {offsets = [0, 0], sizes = [8, 32], strides = [1, 1]} : vector<32x32xf32> to vector<8x32xf32>
    %cst_11 = arith.constant dense<0.000000e+00> : vector<32xf32>
    %20 = vector.multi_reduction <add>, %19, %cst_11 [0] : vector<8x32xf32> to vector<32xf32>
    %21 = vector.shape_cast %20 : vector<32xf32> to vector<1x32xf32>
    %22 = vector.extract_strided_slice %18 {offsets = [8, 0], sizes = [8, 32], strides = [1, 1]} : vector<32x32xf32> to vector<8x32xf32>
    %cst_12 = arith.constant dense<0.000000e+00> : vector<32xf32>
    %23 = vector.multi_reduction <add>, %22, %cst_12 [0] : vector<8x32xf32> to vector<32xf32>
    %24 = vector.shape_cast %23 : vector<32xf32> to vector<1x32xf32>
    %25 = arith.subf %21, %24 : vector<1x32xf32>
    %26 = vector.broadcast %0 : f32 to vector<1x32xf32>
    %27 = arith.mulf %26, %25 : vector<1x32xf32>
    %28 = arith.addf %24, %27 : vector<1x32xf32>
    %29 = vector.broadcast %28 : vector<1x32xf32> to vector<4x32xf32>
    %30 = arith.mulf %5, %29 : vector<4x32xf32>
    %cst_13 = arith.constant dense<0.000000e+00> : vector<4xf32>
    %31 = vector.multi_reduction <add>, %30, %cst_13 [1] : vector<4x32xf32> to vector<4xf32>
    %32 = vector.shape_cast %31 : vector<4xf32> to vector<4x1xf32>
    %cst_14 = arith.constant 1.250000e-01 : f32
    %33 = vector.broadcast %cst_14 : f32 to vector<4x1xf32>
    %34 = arith.mulf %32, %33 : vector<4x1xf32>
    %35 = arith.addf %4, %34 : vector<4x1xf32>
    %36 = vector.extract_strided_slice %18 {offsets = [16, 0], sizes = [8, 32], strides = [1, 1]} : vector<32x32xf32> to vector<8x32xf32>
    %cst_15 = arith.constant dense<0.000000e+00> : vector<32xf32>
    %37 = vector.multi_reduction <add>, %36, %cst_15 [0] : vector<8x32xf32> to vector<32xf32>
    %38 = vector.shape_cast %37 : vector<32xf32> to vector<1x32xf32>
    %39 = vector.extract_strided_slice %18 {offsets = [24, 0], sizes = [8, 32], strides = [1, 1]} : vector<32x32xf32> to vector<8x32xf32>
    %cst_16 = arith.constant dense<0.000000e+00> : vector<32xf32>
    %40 = vector.multi_reduction <add>, %39, %cst_16 [0] : vector<8x32xf32> to vector<32xf32>
    %41 = vector.shape_cast %40 : vector<32xf32> to vector<1x32xf32>
    %42 = arith.subf %38, %41 : vector<1x32xf32>
    %43 = vector.broadcast %0 : f32 to vector<1x32xf32>
    %44 = arith.mulf %43, %42 : vector<1x32xf32>
    %45 = arith.addf %41, %44 : vector<1x32xf32>
    %46 = vector.broadcast %45 : vector<1x32xf32> to vector<4x32xf32>
    %47 = arith.mulf %5, %46 : vector<4x32xf32>
    %cst_17 = arith.constant dense<0.000000e+00> : vector<4xf32>
    %48 = vector.multi_reduction <add>, %47, %cst_17 [1] : vector<4x32xf32> to vector<4xf32>
    %49 = vector.shape_cast %48 : vector<4xf32> to vector<4x1xf32>
    %cst_18 = arith.constant 1.250000e-01 : f32
    %50 = vector.broadcast %cst_18 : f32 to vector<4x1xf32>
    %51 = arith.mulf %49, %50 : vector<4x1xf32>
    %52 = arith.addf %4, %51 : vector<4x1xf32>
    %53 = tpu.concatenate %35, %52 in 0 : vector<4x1xf32>, vector<4x1xf32> -> vector<8x1xf32>
    %c0_19 = arith.constant 0 : index
    %c0_20 = arith.constant 0 : index
    %54 = vector.load %arg5[%c0_19, %c0_20] : memref<8x1xf32, #tpu.memory_space<vmem>>, vector<8x1xf32>
    %55 = vector.broadcast %53 : vector<8x1xf32> to vector<8x256xf32>
    %56 = arith.addf %17, %55 : vector<8x256xf32>
    %57 = vector.broadcast %54 : vector<8x1xf32> to vector<8x256xf32>
    %58 = arith.mulf %57, %56 : vector<8x256xf32>
    %c0_21 = arith.constant 0 : index
    %c0_22 = arith.constant 0 : index
    %59 = vector.load %arg6[%c0_21, %c0_22] : memref<8x256xf32, #tpu.memory_space<vmem>>, vector<8x256xf32>
    tpu.vector_store %arg6[%c0_21, %c0_22], %58 {strides = array<i32>} : memref<8x256xf32, #tpu.memory_space<vmem>>, vector<8x256xf32>,
    return
  }
  func.func @transform_0(%arg0: i32, %arg1: memref<2xf32, #tpu.memory_space<smem>>) -> (i32, i32) {
    %c0_i32 = arith.constant 0 : i32
    %c0_i32_0 = arith.constant 0 : i32
    return %arg0, %c0_i32 : i32, i32
  }
  func.func @transform_1(%arg0: i32, %arg1: memref<2xf32, #tpu.memory_space<smem>>) -> (i32, i32) {
    %c0_i32 = arith.constant 0 : i32
    %c0_i32_0 = arith.constant 0 : i32
    return %arg0, %c0_i32 : i32, i32
  }
  func.func @transform_2(%arg0: i32, %arg1: memref<2xf32, #tpu.memory_space<smem>>) -> (i32, i32) {
    %c0_i32 = arith.constant 0 : i32
    %c0_i32_0 = arith.constant 0 : i32
    %c0_i32_1 = arith.constant 0 : i32
    return %c0_i32, %c0_i32_0 : i32, i32
  }
  func.func @transform_3(%arg0: i32, %arg1: memref<2xf32, #tpu.memory_space<smem>>) -> (i32, i32) {
    %c0_i32 = arith.constant 0 : i32
    %c0_i32_0 = arith.constant 0 : i32
    return %arg0, %c0_i32 : i32, i32
  }
  func.func @transform_4(%arg0: i32, %arg1: memref<2xf32, #tpu.memory_space<smem>>) -> (i32, i32) {
    %c0_i32 = arith.constant 0 : i32
    %c0_i32_0 = arith.constant 0 : i32
    return %arg0, %c0_i32 : i32, i32
  }
}

</mosaic_0001>

<llo_original>
// kernel: tpu_custom_call.1
$region0: #{tpu_custom_call.1}
  #allocation0 [shape = 'u32[]', space=smem, size = 0x4, offset = 0x4, fixed_abs, tag = 'smem constant byte address 0x4 - core index']
  #allocation1 [shape = 'u32[144,128]{1,0:T(1,128)}', space=vmem, size = 0x12000, scoped, tag = 'internal scratch']
  #allocation2 [shape = 's32[1]{0}', space=sflag, size = 0x4, scoped, tag = 'scoped memory for tpu_custom_call.1']
  #allocation3 [shape = 'u8[512]{0}', space=smem, size = 0x200, scoped, tag = 'prefetched SMEM operand 0']
  %s0 = inlined_call_operand.vmem [shape: f32[2], index: 0, kind: input, shape index: {}]
  %s1 = inlined_call_operand.hbm [shape: f32[24,256], index: 1, kind: input, shape index: {}]
  %s2 = inlined_call_operand.hbm [shape: f32[32,32], index: 2, kind: input, shape index: {}]
  %s3 = inlined_call_operand.vmem [shape: f32[4,41], index: 3, kind: input, shape index: {}]
  %s4 = inlined_call_operand.vmem [shape: f32[8,1], index: 4, kind: input, shape index: {}]
  %s5 = inlined_call_operand.hbm [shape: f32[8,256], index: 5, kind: output, shape index: {}]
  %s6 = sld [smem:[#allocation0]]
  $region34: #{tpu_custom_call.1} parent=0
    _
  %s8 = ssub.s32 1, %s6
  %s9 = scalar_select 0, %s8, %s6
  %s10 = sshll.u32 %s0, 4
  %s11 = int_to_ptr.vmem [resolvable:$true] %s10
  %13 = dma.vmem_to_smem %s11, 16, [#allocation3], [#allocation2]
  %14 = dma.done [#allocation2], 16
  %15 = sfence
  $region1: #{tpu_custom_call.1} parent=0
    #allocation4 [shape = 'u8[24576]{0}', space=vmem, size = 0x6000, scoped, tag = 'input window, operand 1, single buffered']
    #allocation5 [shape = 's32[1]{0}', space=sflag, size = 0x4, scoped, tag = 'scoped memory for tpu_custom_call.1']
    #allocation6 [shape = 's32[1]{0}', space=sflag, size = 0x4, scoped, tag = 'scoped memory for tpu_custom_call.1']
    #allocation7 [shape = 'u8[16384]{0}', space=vmem, size = 0x4000, scoped, tag = 'input window, operand 2, single buffered']
    #allocation8 [shape = 's32[1]{0}', space=sflag, size = 0x4, scoped, tag = 'scoped memory for tpu_custom_call.1']
    #allocation9 [shape = 'u8[8192]{0}', space=vmem, size = 0x2000, scoped, tag = 'output window, operand 0, single buffered']
    %16 = vsyncpa [#allocation5], 0
    %17 = vsyncpa [#allocation8], 0
    %18 = vsyncpa [#allocation6], 0
    // Predicated region
    $region2: #{tpu_custom_call.1} parent=1 // pred_check
      _
    $region3: #{tpu_custom_call.1} parent=1 // pred_check_branch
      %20 = sbr.rel (0) target = $region5
    $region4: #{tpu_custom_call.1} parent=1 // pred_region
      %s22 = ssub.s32 768, 768
      %23 = vsyncadd [#allocation5], %s22
      %s24 = sshll.u32 [#allocation4], 4
      %s25 = int_to_ptr.vmem [resolvable:$true] %s24
      %30 = dma.hbm_to_vmem [thread:$0]  %s1, 768, %s25, [#allocation5], 256, 256, 16
    $region5: #{tpu_custom_call.1} parent=1 // pred_fallthru
      _
    // Predicated region
    $region6: #{tpu_custom_call.1} parent=1 // pred_check
      _
    $region7: #{tpu_custom_call.1} parent=1 // pred_check_branch
      %32 = sbr.rel (0) target = $region9
    $region8: #{tpu_custom_call.1} parent=1 // pred_region
      %s34 = ssub.s32 512, 512
      %35 = vsyncadd [#allocation8], %s34
      %s36 = sshll.u32 [#allocation7], 4
      %s37 = int_to_ptr.vmem [resolvable:$true] %s36
      %42 = dma.hbm_to_vmem [thread:$0]  %s2, 512, %s37, [#allocation8], 128, 128, 8
    $region9: #{tpu_custom_call.1} parent=1 // pred_fallthru
      _
    // Predicated region
    $region10: #{tpu_custom_call.1} parent=1 // pred_check
      _
    $region11: #{tpu_custom_call.1} parent=1 // pred_check_branch
      %44 = sbr.rel (0) target = $region13
    $region12: #{tpu_custom_call.1} parent=1 // pred_region
      _
    $region13: #{tpu_custom_call.1} parent=1 // pred_fallthru
      _
    // Predicated region
    $region14: #{tpu_custom_call.1} parent=1 // pred_check
      _
    $region15: #{tpu_custom_call.1} parent=1 // pred_check_branch
      %46 = sbr.rel (0) target = $region17
    $region16: #{tpu_custom_call.1} parent=1 // pred_region
      _
    $region17: #{tpu_custom_call.1} parent=1 // pred_fallthru
      _
    // Predicated region
    $region18: #{tpu_custom_call.1} parent=1 // pred_check
      _
    $region19: #{tpu_custom_call.1} parent=1 // pred_check_branch
      %48 = sbr.rel (0) target = $region21
    $region20: #{tpu_custom_call.1} parent=1 // pred_region
      %49 = dma.done [#allocation5], 768
    $region21: #{tpu_custom_call.1} parent=1 // pred_fallthru
      _
    // Predicated region
    $region22: #{tpu_custom_call.1} parent=1 // pred_check
      _
    $region23: #{tpu_custom_call.1} parent=1 // pred_check_branch
      %51 = sbr.rel (0) target = $region25
    $region24: #{tpu_custom_call.1} parent=1 // pred_region
      %52 = dma.done [#allocation8], 512
    $region25: #{tpu_custom_call.1} parent=1 // pred_fallthru
      _
    %s53 = sld [smem:[#allocation3]]
    %s54 = sld [smem:[#allocation3 + $0x1]]
    %v55 = vld [vmem:[%s3] sm:$0xf]
    %v56 = vstv %s54
    %v57 = vmul.f32 %v56, %v55
    %s58 = ssub.f32 1.0, %s54
    %v59 = vstv %s58
    %v60 = vmul.f32 %v59, %v55
    %62 = vrot.lane.b32.xlu0 %v60, 4
    %v63 = vpop.permute.xlu0 %62
    %vm65 = vcmask 31744
    %v66 = vsel %vm65, %v55, %v57
    %vm67 = vcmask 64512
    %v68 = vsel %vm67, %v66, %v63
    %vm69 = vcmask 97280
    %v70 = vsel %vm69, %v68, 0.0
    %72 = vrot.lane.b32.xlu0 %v68, 12
    %v73 = vpop.permute.xlu0 %72
    %v75 = vsel %vm69, 0.0, %v73
    %v77 = vrot.slane %v75, 4
    %vm79 = vcmask 1043456
    %v80 = vsel %vm79, %v70, %v77
    %v81 = vld [vmem:[#allocation4] sm:$0xff]
    %v82 = vld [vmem:[#allocation4 + $0x8] sm:$0xff]
    %v83 = vld [vmem:[#allocation4 + $0x10] sm:$0xff]
    %v84 = vld [vmem:[#allocation4 + $0x18] sm:$0xff]
    %v85 = vld [vmem:[#allocation4 + $0x20] sm:$0xff]
    %v86 = vld [vmem:[#allocation4 + $0x28] sm:$0xff]
    %v87 = vld [vmem:[#allocation7] sm:$0xff]
    %v88 = vld [vmem:[#allocation7 + $0x8] sm:$0xff]
    %v89 = vld [vmem:[#allocation7 + $0x10] sm:$0xff]
    %v90 = vld [vmem:[#allocation7 + $0x18] sm:$0xff]
    %vm91 = vcmask 261120
    %v92 = vsel %vm91, %v87, 0.0
    %v93 = vrot.slane %v92, 4
    %v94 = vadd.f32 %v92, %v93
    %v95 = vrot.slane %v94, 2
    %v96 = vadd.f32 %v94, %v95
    %v97 = vrot.slane %v96, 1
    %v98 = vadd.f32 %v96, %v97
    %v99 = vsel %vm91, %v88, 0.0
    %v100 = vrot.slane %v99, 4
    %v101 = vadd.f32 %v99, %v100
    %v102 = vrot.slane %v101, 2
    %v103 = vadd.f32 %v101, %v102
    %v104 = vrot.slane %v103, 1
    %v105 = vadd.f32 %v103, %v104
    %v106 = vsub.f32 %v98, %v105
    %v107 = vstv %s53
    %v108 = vmul.f32 %v107, %v106
    %v109 = vadd.f32 %v105, %v108
    %111 = vrot.lane.b32.xlu0 %v109, 9
    %v112 = vpop.permute.xlu0 %111
    %v114 = vmul.f32 %v55, %v112
    %116 = vrot.lane.b32.xlu0 %v114, 119
    %v117 = vpop.permute.xlu0 %116
    %vm119 = vcmask 257024
    %v120 = vsel %vm119, %v117, 0.0
    %121 = vadd.xlane.f32.xlu0 %v120
    %v122 = vpop.xlane.xlu0 %121
    %v123 = vmul.f32 %v122, 0.125
    %v124 = vadd.f32 %v55, %v123
    %v125 = vsel %vm91, %v89, 0.0
    %v126 = vrot.slane %v125, 4
    %v127 = vadd.f32 %v125, %v126
    %v128 = vrot.slane %v127, 2
    %v129 = vadd.f32 %v127, %v128
    %v130 = vrot.slane %v129, 1
    %v131 = vadd.f32 %v129, %v130
    %v132 = vsel %vm91, %v90, 0.0
    %v133 = vrot.slane %v132, 4
    %v134 = vadd.f32 %v132, %v133
    %v135 = vrot.slane %v134, 2
    %v136 = vadd.f32 %v134, %v135
    %v137 = vrot.slane %v136, 1
    %v138 = vadd.f32 %v136, %v137
    %v139 = vsub.f32 %v131, %v138
    %v140 = vmul.f32 %v107, %v139
    %v141 = vadd.f32 %v138, %v140
    %143 = vrot.lane.b32.xlu0 %v141, 9
    %v144 = vpop.permute.xlu0 %143
    %v146 = vmul.f32 %v55, %v144
    %148 = vrot.lane.b32.xlu0 %v146, 119
    %v149 = vpop.permute.xlu0 %148
    %v151 = vsel %vm119, %v149, 0.0
    %152 = vadd.xlane.f32.xlu0 %v151
    %v153 = vpop.xlane.xlu0 %152
    %v154 = vmul.f32 %v153, 0.125
    %v155 = vadd.f32 %v55, %v154
    %v157 = vrot.slane %v155, 4
    %v159 = vsel %vm79, %v124, %v157
    %v160 = vld [vmem:[%s4] sm:$0xff]
    %162 = vset.pattern.permute.xlu0 8
    %163 = vperm.xlu0 %162, %v159
    %v164 = vpop.permute.xlu0 %163
    %vm166 = vcmask 195584
    %v168 = vsel %vm166, %v80, 0
    %170 = vmatprep.subr.mxu0 0.0
    %171 = vmatpush1.msra.mxu0 0.0
    %172 = vmatprep.subr.mxu0 0.0
    %173 = vmatpush1.msra.mxu0 0.0
    %174 = vmatprep.subr.mxu0 0.0
    %175 = vmatpush1.msra.mxu0 0.0
    %176 = vmatprep.subr.mxu0 0.0
    %177 = vmatpush1.msra.mxu0 0.0
    %178 = vmatprep.subr.mxu0 0.0
    %179 = vmatpush1.msra.mxu0 0.0
    %180 = vmatprep.subr.mxu0 0.0
    %181 = vmatpush1.msra.mxu0 0.0
    %182 = vmatprep.subr.mxu0 0.0
    %183 = vmatpush1.msra.mxu0 0.0
    %184 = vmatprep.subr.mxu0 0.0
    %185 = vmatpush1.msra.mxu0 0.0
    %186 = vmatprep.subr.mxu0 0.0
    %187 = vmatpush1.msra.mxu0 0.0
    %188 = vmatprep.subr.mxu0 0.0
    %189 = vmatpush1.msra.mxu0 0.0
    %190 = vmatprep.subr.mxu0 0.0
    %191 = vmatpush1.msra.mxu0 0.0
    %192 = vmatprep.subr.mxu0 0.0
    %193 = vmatpush1.msra.mxu0 0.0
    %194 = vmatprep.subr.mxu0 0.0
    %195 = vmatpush1.msra.mxu0 0.0
    %196 = vmatprep.subr.mxu0 %v86
    %197 = vmatpush1.msra.mxu0 %v85
    %198 = vmatprep.subr.mxu0 %v84
    %199 = vmatpush1.msra.mxu0 %v83
    %200 = vmatprep.subr.mxu0 %v82
    %201 = vmatpush1.msra.mxu0 %v81
    %202 = vmatprep.subr.mxu0 0.0
    %203 = vmatpush2.msra.mxu0 0.0
    %204 = vmatprep.subr.mxu0 0.0
    %205 = vmatpush2.msra.mxu0 0.0
    %206 = vmatprep.subr.mxu0 0.0
    %207 = vmatpush2.msra.mxu0 0.0
    %208 = vmatprep.subr.mxu0 0.0
    %209 = vmatpush2.msra.mxu0 0.0
    %210 = vmatprep.subr.mxu0 0.0
    %211 = vmatpush2.msra.mxu0 0.0
    %212 = vmatprep.subr.mxu0 0.0
    %213 = vmatpush2.msra.mxu0 0.0
    %214 = vmatprep.subr.mxu0 0.0
    %215 = vmatpush2.msra.mxu0 0.0
    %216 = vmatprep.subr.mxu0 0.0
    %217 = vmatpush2.msra.mxu0 0.0
    %218 = vmatprep.subr.mxu0 0.0
    %219 = vmatpush2.msra.mxu0 0.0
    %220 = vmatprep.subr.mxu0 0.0
    %221 = vmatpush2.msra.mxu0 0.0
    %222 = vmatprep.subr.mxu0 0.0
    %223 = vmatpush2.msra.mxu0 0.0
    %224 = vmatprep.subr.mxu0 0.0
    %225 = vmatpush2.msra.mxu0 0.0
    %226 = vmatprep.subr.mxu0 0.0
    %227 = vmatpush2.msra.mxu0 0.0
    %228 = vmatprep.subr.mxu0 0.0
    %229 = vmatpush2.msra.mxu0 0.0
    %230 = vmatprep.subr.mxu0 0.0
    %231 = vmatpush2.msra.mxu0 0.0
    %232 = vmatprep.subr.mxu0 0.0
    %233 = vmatpush2.msra.mxu0 0.0
    %234 = vmatprep.mubr.f32.mxu0 0.0
    %235 = vmatmul.mubr.f32.gmra.mxu0 %v168
    %v236 = vpop.f32.mrf.mxu0
    %v237 = vadd.f32 %v164, %v236
    %v238 = vpop.f32.mrf.mxu0
    %v239 = vadd.f32 %v164, %v238
    %240 = vdwg.mxu0
    %242 = vset.pattern.permute.xlu0 0
    %243 = vperm.xlu0 %242, %v160
    %v244 = vpop.permute.xlu0 %243
    %v246 = vmul.f32 %v244, %v237
    %v247 = vmul.f32 %v244, %v239
    %248 = vst [vmem:[#allocation9] sm:$0xff] %v246
    %249 = vst [vmem:[#allocation9 + $0x8] sm:$0xff] %v247
    // Predicated region
    $region26: #{tpu_custom_call.1} parent=1 // pred_check
      _
    $region27: #{tpu_custom_call.1} parent=1 // pred_check_branch
      %251 = sbr.rel (0) target = $region29
    $region28: #{tpu_custom_call.1} parent=1 // pred_region
      %s253 = ssub.s32 256, 256
      %254 = vsyncadd [#allocation6], %s253
      %s256 = sshll.u32 [#allocation9], 4
      %s257 = int_to_ptr.vmem [resolvable:$true] %s256
      %259 = dma.vmem_to_hbm [thread:$0]  %s257, 256, %s5, [#allocation6]
    $region29: #{tpu_custom_call.1} parent=1 // pred_fallthru
      _
    // Predicated region
    $region30: #{tpu_custom_call.1} parent=1 // pred_check
      _
    $region31: #{tpu_custom_call.1} parent=1 // pred_check_branch
      %261 = sbr.rel (0) target = $region33
    $region32: #{tpu_custom_call.1} parent=1 // pred_region
      %262 = dma.done [#allocation6], 256
    $region33: #{tpu_custom_call.1} parent=1 // pred_fallthru
      _
    %263 = vsyncpa [#allocation5], 1
    %264 = vsyncpa [#allocation8], 1
    %265 = vsyncpa [#allocation6], 1

</llo_original>
